<compile_context>
chip_gen: v5e
topology: v5e:2x2
jax: 0.10.0
libtpu: 0.0.40
codegen_flags: <defaults>
</compile_context>

<pallas_src>
import functools

import jax
import jax.numpy as jnp
import numpy as np
from jax import lax
from jax.experimental import pallas as pl
from jax.experimental.pallas import tpu as pltpu


def _cdiv(a, b):
    return -(-a // b)


def _round_up(a, b):
    return _cdiv(a, b) * b


# Identity rotation (row-major). Padding BOTH pred and gt with this (and zero translations)
# makes padded batch elements contribute exactly 0, so no in-kernel mask is needed.
_EYE9 = np.array([1.0, 0.0, 0.0, 0.0, 1.0, 0.0, 0.0, 0.0, 1.0], dtype=np.float32)


def _mcc_kernel(scal_ref, rp_ref, tp_ref, rg_ref, tg_ref, out_ref, *, block_rows):
    """One batch tile of `block_rows` sublane rows (= block_rows * 128 batch elements).

    scal_ref : SMEM (2,) f32         -- [c/9, c/3] with c = 0.5 / sigma^2
    rp_ref   : VMEM (9, SB, 128) f32 -- R_pred, component-major, lane-dense batch
    tp_ref   : VMEM (3, SB, 128) f32 -- t_pred
    rg_ref   : VMEM (9, SB, 128) f32 -- R_gt
    tg_ref   : VMEM (3, SB, 128) f32 -- t_gt
    out_ref  : VMEM (1, 1, 128) f32  -- lane-dense per-tile partial sum of
                                        2 - exp(-r_loss*c) - exp(-t_loss*c)
    """
    c9 = scal_ref[0]
    c3 = scal_ref[1]
    nchunks = block_rows // 8

    def chunk(ci, acc):
        s = pl.multiple_of(ci * 8, 8)

        # Load each of the 18 rotation component rows of this (8,128) chunk exactly once
        # (previously each was re-materialized 3x); keeps live vregs ~24-28, no spills.
        rp = [rp_ref[r, pl.ds(s, 8), :] for r in range(9)]
        rg = [rg_ref[r, pl.ds(s, 8), :] for r in range(9)]

        # sum_{i,j} ((R_pred^T @ R_gt)_{ij} - delta_{ij})^2 ; slab row 3k+i holds R[k,i].
        r_acc = None
        for i in range(3):
            for j in range(3):
                m = rp[i] * rg[j] + rp[3 + i] * rg[3 + j] + rp[6 + i] * rg[6 + j]
                d = m - 1.0 if i == j else m
                r_acc = d * d if r_acc is None else r_acc + d * d

        # sum_k (t_pred_k - t_gt_k)^2
        t_acc = None
        for k in range(3):
            td = tp_ref[k, pl.ds(s, 8), :] - tg_ref[k, pl.ds(s, 8), :]
            t_acc = td * td if t_acc is None else t_acc + td * td

        # 1/9 and 1/3 are folded into c9/c3 in the wrapper; exp runs on the EUP slot.
        contrib = 2.0 - jnp.exp(-(r_acc * c9)) - jnp.exp(-(t_acc * c3))
        return acc + contrib

    unroll = nchunks if nchunks <= 8 else 8
    acc = lax.fori_loop(0, nchunks, chunk, jnp.zeros((8, 128), jnp.float32),
                        unroll=unroll)

    out_ref[...] = jnp.sum(acc, axis=0, keepdims=True)[None]        # (1, 1, 128)


def _tile_plan(batch):
    """Pick (sublane rows per tile, grid size)."""
    rows = max(_cdiv(batch, 128), 1)
    if rows <= 8:
        return _round_up(rows, 8), 1          # single small tile
    # >= 2 grid steps: DMA/compute overlap everywhere and both TensorCores on v7x.
    # SB capped at 256 rows so 4 double-buffered input streams (~6 MiB) stay well inside
    # v5e's 16 MiB default scoped VMEM.
    sb = min(256, _round_up(_cdiv(rows, 2), 8))
    return sb, _cdiv(rows, sb)


def mcc_loss_v3_packed(r_pred_cm, t_pred_cm, r_gt_cm, t_gt_cm, sigma_):
    """Fast path: component-major inputs, no relayout beyond minimal batch padding.

    r_*_cm : (9, B) -- row 3k+i holds R[k, i] (row-major 3x3), batch on the fast axis
    t_*_cm : (3, B)
    Producers that can emit this layout skip the XLA transpose `mcc_loss_v3` performs.
    """
    B = r_pred_cm.shape[1]
    sb, grid = _tile_plan(B)
    rows_pad = sb * grid
    b_pad = rows_pad * 128
    pad = b_pad - B

    eye_col = jnp.asarray(_EYE9)[:, None]                           # (9, 1)

    def pack_rot(x):
        x = x.astype(jnp.float32)
        if pad:
            x = jnp.concatenate([x, jnp.broadcast_to(eye_col, (9, pad))], axis=1)
        return x.reshape(9, rows_pad, 128)

    def pack_t(x):
        x = x.astype(jnp.float32)
        if pad:
            x = jnp.pad(x, ((0, 0), (0, pad)))                      # equal (zero) pads
        return x.reshape(3, rows_pad, 128)

    # sigma-derived scalars hoisted out of the kernel; 1/9 and 1/3 folded in.
    sig = sigma_.astype(jnp.float32).reshape(-1)[0]
    c = 0.5 / (sig * sig)
    beta = 1.0 / (1.0 - jnp.exp(-c))
    scal = jnp.stack([c / 9.0, c / 3.0])

    kernel = functools.partial(_mcc_kernel, block_rows=sb)

    partials = pl.pallas_call(
        kernel,
        out_shape=jax.ShapeDtypeStruct((grid, 1, 128), jnp.float32),
        grid=(grid,),
        in_specs=[
            pl.BlockSpec(memory_space=pltpu.MemorySpace.SMEM),       # [c/9, c/3]
            pl.BlockSpec((9, sb, 128), lambda g: (0, g, 0)),         # R_pred slab
            pl.BlockSpec((3, sb, 128), lambda g: (0, g, 0)),         # t_pred slab
            pl.BlockSpec((9, sb, 128), lambda g: (0, g, 0)),         # R_gt slab
            pl.BlockSpec((3, sb, 128), lambda g: (0, g, 0)),         # t_gt slab
        ],
        out_specs=pl.BlockSpec((1, 1, 128), lambda g: (g, 0, 0)),    # per-tile partials
        compiler_params=pltpu.CompilerParams(
            dimension_semantics=("parallel",)),
    )(scal, pack_rot(r_pred_cm), pack_t(t_pred_cm),
      pack_rot(r_gt_cm), pack_t(t_gt_cm))

    # Finalize on a tiny array: mean over batch + bandwidth scaling.
    return jnp.sum(partials) * beta / B


def mcc_loss_v3(R_pred, t_pred, R_gt, t_gt, sigma_):
    """Compatibility wrapper for the PyTorch layout. R_*: (B,3,3), t_*: (B,3), sigma_: (1,).

    Jit this end-to-end so the cast/transpose below fuses into one relayout; producers that
    can supply component-major (9,B)/(3,B) slabs should call `mcc_loss_v3_packed` directly.
    """
    B = R_pred.shape[0]
    rp = R_pred.reshape(B, 9).astype(jnp.float32).T                  # (9, B)
    rg = R_gt.reshape(B, 9).astype(jnp.float32).T
    tp = t_pred.reshape(B, 3).astype(jnp.float32).T                  # (3, B)
    tg = t_gt.reshape(B, 3).astype(jnp.float32).T
    return mcc_loss_v3_packed(rp, tp, rg, tg, sigma_)


def mcc_loss_v3_ref(R_pred, t_pred, R_gt, t_gt, sigma_):
    """Pure-JAX reference mirroring the PyTorch forward exactly."""
    R_pred = R_pred.astype(jnp.float32)
    R_gt = R_gt.astype(jnp.float32)
    t_pred = t_pred.astype(jnp.float32)
    t_gt = t_gt.astype(jnp.float32)
    sigma_ = sigma_.astype(jnp.float32)

    identity = jnp.eye(3, dtype=jnp.float32)[None]
    beta = (1.0 - jnp.exp(-(0.5 * sigma_ ** (-2)))) ** (-1)          # (1,)
    m = jnp.einsum("bki,bkj->bij", R_pred, R_gt)                     # R_pred^T @ R_gt
    r_loss = jnp.mean((m - identity) ** 2, axis=(1, 2))              # (B,)
    t_loss = jnp.mean((t_pred - t_gt) ** 2, axis=-1)                 # (B,)

    def exp_mcc(loss):
        e = jnp.exp(-(loss * 0.5 * sigma_ ** (-2)))                  # (B,)
        return jnp.mean((-e + 1.0) * jnp.squeeze(beta, -1), axis=0)  # scalar

    return exp_mcc(r_loss) + exp_mcc(t_loss)


if __name__ == "__main__":
    key = jax.random.PRNGKey(0)
    loss_fn = jax.jit(mcc_loss_v3)

    def run_case(B, k):
        k1, k2, k3, k4 = jax.random.split(k, 4)
        R_pred = jax.random.normal(k1, (B, 3, 3), dtype=jnp.float32)
        R_gt = jax.random.normal(k2, (B, 3, 3), dtype=jnp.float32)
        t_pred = jax.random.normal(k3, (B, 3), dtype=jnp.float32)
        t_gt = jax.random.normal(k4, (B, 3), dtype=jnp.float32)
        sigma_ = jnp.array([0.7], dtype=jnp.float32)

        out = jax.block_until_ready(loss_fn(R_pred, t_pred, R_gt, t_gt, sigma_))
        ref = jax.block_until_ready(mcc_loss_v3_ref(R_pred, t_pred, R_gt, t_gt, sigma_))
        np.testing.assert_allclose(np.asarray(out), np.asarray(ref),
                                   rtol=1e-4, atol=1e-6)

    k1, k2, k3 = jax.random.split(key, 3)
    run_case(2, k1)        # module-spec small shape: single 8-row tile, identity padding
    run_case(8500, k2)     # rows=67 -> SB=40, G=2: multi-tile, minimal padding
    run_case(70000, k3)    # rows=547 -> SB=256 cap, G=3: big-tile + chunk-loop path

    print("KERNEL_OK")
</pallas_src>

<mosaic_0001>
module attributes {stable_mosaic.version = 11 : i64} {
  func.func @_mcc_kernel(%arg0: i32, %arg1: memref<2xf32, #tpu.memory_space<smem>>, %arg2: memref<9x8x128xf32, #tpu.memory_space<vmem>>, %arg3: memref<3x8x128xf32, #tpu.memory_space<vmem>>, %arg4: memref<9x8x128xf32, #tpu.memory_space<vmem>>, %arg5: memref<3x8x128xf32, #tpu.memory_space<vmem>>, %arg6: memref<1x1x128xf32, #tpu.memory_space<vmem>>) attributes {dimension_semantics = [#tpu.dimension_semantics<parallel>], iteration_bounds = array<i64: 1>, scalar_prefetch = 0 : i64, scratch_operands = 0 : i64, tpu.core_type = #tpu.core_type<tc>, window_params = [{transform_indices = @transform_0, window_bounds = array<i64: 2>}, {transform_indices = @transform_1, window_bounds = array<i64: 9, 8, 128>}, {transform_indices = @transform_2, window_bounds = array<i64: 3, 8, 128>}, {transform_indices = @transform_3, window_bounds = array<i64: 9, 8, 128>}, {transform_indices = @transform_4, window_bounds = array<i64: 3, 8, 128>}, {transform_indices = @transform_5, window_bounds = array<i64: 1, 1, 128>}]} {
    %c0 = arith.constant 0 : index
    %0 = memref.load %arg1[%c0] : memref<2xf32, #tpu.memory_space<smem>>
    %c1 = arith.constant 1 : index
    %1 = memref.load %arg1[%c1] : memref<2xf32, #tpu.memory_space<smem>>
    %cst = arith.constant 0.000000e+00 : f32
    %2 = vector.broadcast %cst : f32 to vector<8x128xf32>
    %c0_i32 = arith.constant 0 : i32
    %c8_i32 = arith.constant 8 : i32
    %3 = arith.muli %c0_i32, %c8_i32 : i32
    %4 = tpu.assume_multiple %3, 8 : i32
    %c0_0 = arith.constant 0 : index
    %5 = arith.index_cast %4 : i32 to index
    %c0_1 = arith.constant 0 : index
    %6 = vector.load %arg2[%c0_0, %5, %c0_1] : memref<9x8x128xf32, #tpu.memory_space<vmem>>, vector<1x8x128xf32>
    %7 = vector.shape_cast %6 : vector<1x8x128xf32> to vector<8x128xf32>
    %c1_2 = arith.constant 1 : index
    %8 = arith.index_cast %4 : i32 to index
    %c0_3 = arith.constant 0 : index
    %9 = vector.load %arg2[%c1_2, %8, %c0_3] : memref<9x8x128xf32, #tpu.memory_space<vmem>>, vector<1x8x128xf32>
    %10 = vector.shape_cast %9 : vector<1x8x128xf32> to vector<8x128xf32>
    %c2 = arith.constant 2 : index
    %11 = arith.index_cast %4 : i32 to index
    %c0_4 = arith.constant 0 : index
    %12 = vector.load %arg2[%c2, %11, %c0_4] : memref<9x8x128xf32, #tpu.memory_space<vmem>>, vector<1x8x128xf32>
    %13 = vector.shape_cast %12 : vector<1x8x128xf32> to vector<8x128xf32>
    %c3 = arith.constant 3 : index
    %14 = arith.index_cast %4 : i32 to index
    %c0_5 = arith.constant 0 : index
    %15 = vector.load %arg2[%c3, %14, %c0_5] : memref<9x8x128xf32, #tpu.memory_space<vmem>>, vector<1x8x128xf32>
    %16 = vector.shape_cast %15 : vector<1x8x128xf32> to vector<8x128xf32>
    %c4 = arith.constant 4 : index
    %17 = arith.index_cast %4 : i32 to index
    %c0_6 = arith.constant 0 : index
    %18 = vector.load %arg2[%c4, %17, %c0_6] : memref<9x8x128xf32, #tpu.memory_space<vmem>>, vector<1x8x128xf32>
    %19 = vector.shape_cast %18 : vector<1x8x128xf32> to vector<8x128xf32>
    %c5 = arith.constant 5 : index
    %20 = arith.index_cast %4 : i32 to index
    %c0_7 = arith.constant 0 : index
    %21 = vector.load %arg2[%c5, %20, %c0_7] : memref<9x8x128xf32, #tpu.memory_space<vmem>>, vector<1x8x128xf32>
    %22 = vector.shape_cast %21 : vector<1x8x128xf32> to vector<8x128xf32>
    %c6 = arith.constant 6 : index
    %23 = arith.index_cast %4 : i32 to index
    %c0_8 = arith.constant 0 : index
    %24 = vector.load %arg2[%c6, %23, %c0_8] : memref<9x8x128xf32, #tpu.memory_space<vmem>>, vector<1x8x128xf32>
    %25 = vector.shape_cast %24 : vector<1x8x128xf32> to vector<8x128xf32>
    %c7 = arith.constant 7 : index
    %26 = arith.index_cast %4 : i32 to index
    %c0_9 = arith.constant 0 : index
    %27 = vector.load %arg2[%c7, %26, %c0_9] : memref<9x8x128xf32, #tpu.memory_space<vmem>>, vector<1x8x128xf32>
    %28 = vector.shape_cast %27 : vector<1x8x128xf32> to vector<8x128xf32>
    %c8 = arith.constant 8 : index
    %29 = arith.index_cast %4 : i32 to index
    %c0_10 = arith.constant 0 : index
    %30 = vector.load %arg2[%c8, %29, %c0_10] : memref<9x8x128xf32, #tpu.memory_space<vmem>>, vector<1x8x128xf32>
    %31 = vector.shape_cast %30 : vector<1x8x128xf32> to vector<8x128xf32>
    %c0_11 = arith.constant 0 : index
    %32 = arith.index_cast %4 : i32 to index
    %c0_12 = arith.constant 0 : index
    %33 = vector.load %arg4[%c0_11, %32, %c0_12] : memref<9x8x128xf32, #tpu.memory_space<vmem>>, vector<1x8x128xf32>
    %34 = vector.shape_cast %33 : vector<1x8x128xf32> to vector<8x128xf32>
    %c1_13 = arith.constant 1 : index
    %35 = arith.index_cast %4 : i32 to index
    %c0_14 = arith.constant 0 : index
    %36 = vector.load %arg4[%c1_13, %35, %c0_14] : memref<9x8x128xf32, #tpu.memory_space<vmem>>, vector<1x8x128xf32>
    %37 = vector.shape_cast %36 : vector<1x8x128xf32> to vector<8x128xf32>
    %c2_15 = arith.constant 2 : index
    %38 = arith.index_cast %4 : i32 to index
    %c0_16 = arith.constant 0 : index
    %39 = vector.load %arg4[%c2_15, %38, %c0_16] : memref<9x8x128xf32, #tpu.memory_space<vmem>>, vector<1x8x128xf32>
    %40 = vector.shape_cast %39 : vector<1x8x128xf32> to vector<8x128xf32>
    %c3_17 = arith.constant 3 : index
    %41 = arith.index_cast %4 : i32 to index
    %c0_18 = arith.constant 0 : index
    %42 = vector.load %arg4[%c3_17, %41, %c0_18] : memref<9x8x128xf32, #tpu.memory_space<vmem>>, vector<1x8x128xf32>
    %43 = vector.shape_cast %42 : vector<1x8x128xf32> to vector<8x128xf32>
    %c4_19 = arith.constant 4 : index
    %44 = arith.index_cast %4 : i32 to index
    %c0_20 = arith.constant 0 : index
    %45 = vector.load %arg4[%c4_19, %44, %c0_20] : memref<9x8x128xf32, #tpu.memory_space<vmem>>, vector<1x8x128xf32>
    %46 = vector.shape_cast %45 : vector<1x8x128xf32> to vector<8x128xf32>
    %c5_21 = arith.constant 5 : index
    %47 = arith.index_cast %4 : i32 to index
    %c0_22 = arith.constant 0 : index
    %48 = vector.load %arg4[%c5_21, %47, %c0_22] : memref<9x8x128xf32, #tpu.memory_space<vmem>>, vector<1x8x128xf32>
    %49 = vector.shape_cast %48 : vector<1x8x128xf32> to vector<8x128xf32>
    %c6_23 = arith.constant 6 : index
    %50 = arith.index_cast %4 : i32 to index
    %c0_24 = arith.constant 0 : index
    %51 = vector.load %arg4[%c6_23, %50, %c0_24] : memref<9x8x128xf32, #tpu.memory_space<vmem>>, vector<1x8x128xf32>
    %52 = vector.shape_cast %51 : vector<1x8x128xf32> to vector<8x128xf32>
    %c7_25 = arith.constant 7 : index
    %53 = arith.index_cast %4 : i32 to index
    %c0_26 = arith.constant 0 : index
    %54 = vector.load %arg4[%c7_25, %53, %c0_26] : memref<9x8x128xf32, #tpu.memory_space<vmem>>, vector<1x8x128xf32>
    %55 = vector.shape_cast %54 : vector<1x8x128xf32> to vector<8x128xf32>
    %c8_27 = arith.constant 8 : index
    %56 = arith.index_cast %4 : i32 to index
    %c0_28 = arith.constant 0 : index
    %57 = vector.load %arg4[%c8_27, %56, %c0_28] : memref<9x8x128xf32, #tpu.memory_space<vmem>>, vector<1x8x128xf32>
    %58 = vector.shape_cast %57 : vector<1x8x128xf32> to vector<8x128xf32>
    %59 = arith.mulf %7, %34 : vector<8x128xf32>
    %60 = arith.mulf %16, %43 : vector<8x128xf32>
    %61 = arith.addf %59, %60 : vector<8x128xf32>
    %62 = arith.mulf %25, %52 : vector<8x128xf32>
    %63 = arith.addf %61, %62 : vector<8x128xf32>
    %cst_29 = arith.constant 1.000000e+00 : f32
    %64 = vector.broadcast %cst_29 : f32 to vector<8x128xf32>
    %65 = arith.subf %63, %64 : vector<8x128xf32>
    %66 = arith.mulf %65, %65 : vector<8x128xf32>
    %67 = arith.mulf %7, %37 : vector<8x128xf32>
    %68 = arith.mulf %16, %46 : vector<8x128xf32>
    %69 = arith.addf %67, %68 : vector<8x128xf32>
    %70 = arith.mulf %25, %55 : vector<8x128xf32>
    %71 = arith.addf %69, %70 : vector<8x128xf32>
    %72 = arith.mulf %71, %71 : vector<8x128xf32>
    %73 = arith.addf %66, %72 : vector<8x128xf32>
    %74 = arith.mulf %7, %40 : vector<8x128xf32>
    %75 = arith.mulf %16, %49 : vector<8x128xf32>
    %76 = arith.addf %74, %75 : vector<8x128xf32>
    %77 = arith.mulf %25, %58 : vector<8x128xf32>
    %78 = arith.addf %76, %77 : vector<8x128xf32>
    %79 = arith.mulf %78, %78 : vector<8x128xf32>
    %80 = arith.addf %73, %79 : vector<8x128xf32>
    %81 = arith.mulf %10, %34 : vector<8x128xf32>
    %82 = arith.mulf %19, %43 : vector<8x128xf32>
    %83 = arith.addf %81, %82 : vector<8x128xf32>
    %84 = arith.mulf %28, %52 : vector<8x128xf32>
    %85 = arith.addf %83, %84 : vector<8x128xf32>
    %86 = arith.mulf %85, %85 : vector<8x128xf32>
    %87 = arith.addf %80, %86 : vector<8x128xf32>
    %88 = arith.mulf %10, %37 : vector<8x128xf32>
    %89 = arith.mulf %19, %46 : vector<8x128xf32>
    %90 = arith.addf %88, %89 : vector<8x128xf32>
    %91 = arith.mulf %28, %55 : vector<8x128xf32>
    %92 = arith.addf %90, %91 : vector<8x128xf32>
    %cst_30 = arith.constant 1.000000e+00 : f32
    %93 = vector.broadcast %cst_30 : f32 to vector<8x128xf32>
    %94 = arith.subf %92, %93 : vector<8x128xf32>
    %95 = arith.mulf %94, %94 : vector<8x128xf32>
    %96 = arith.addf %87, %95 : vector<8x128xf32>
    %97 = arith.mulf %10, %40 : vector<8x128xf32>
    %98 = arith.mulf %19, %49 : vector<8x128xf32>
    %99 = arith.addf %97, %98 : vector<8x128xf32>
    %100 = arith.mulf %28, %58 : vector<8x128xf32>
    %101 = arith.addf %99, %100 : vector<8x128xf32>
    %102 = arith.mulf %101, %101 : vector<8x128xf32>
    %103 = arith.addf %96, %102 : vector<8x128xf32>
    %104 = arith.mulf %13, %34 : vector<8x128xf32>
    %105 = arith.mulf %22, %43 : vector<8x128xf32>
    %106 = arith.addf %104, %105 : vector<8x128xf32>
    %107 = arith.mulf %31, %52 : vector<8x128xf32>
    %108 = arith.addf %106, %107 : vector<8x128xf32>
    %109 = arith.mulf %108, %108 : vector<8x128xf32>
    %110 = arith.addf %103, %109 : vector<8x128xf32>
    %111 = arith.mulf %13, %37 : vector<8x128xf32>
    %112 = arith.mulf %22, %46 : vector<8x128xf32>
    %113 = arith.addf %111, %112 : vector<8x128xf32>
    %114 = arith.mulf %31, %55 : vector<8x128xf32>
    %115 = arith.addf %113, %114 : vector<8x128xf32>
    %116 = arith.mulf %115, %115 : vector<8x128xf32>
    %117 = arith.addf %110, %116 : vector<8x128xf32>
    %118 = arith.mulf %13, %40 : vector<8x128xf32>
    %119 = arith.mulf %22, %49 : vector<8x128xf32>
    %120 = arith.addf %118, %119 : vector<8x128xf32>
    %121 = arith.mulf %31, %58 : vector<8x128xf32>
    %122 = arith.addf %120, %121 : vector<8x128xf32>
    %cst_31 = arith.constant 1.000000e+00 : f32
    %123 = vector.broadcast %cst_31 : f32 to vector<8x128xf32>
    %124 = arith.subf %122, %123 : vector<8x128xf32>
    %125 = arith.mulf %124, %124 : vector<8x128xf32>
    %126 = arith.addf %117, %125 : vector<8x128xf32>
    %c0_32 = arith.constant 0 : index
    %127 = arith.index_cast %4 : i32 to index
    %c0_33 = arith.constant 0 : index
    %128 = vector.load %arg3[%c0_32, %127, %c0_33] : memref<3x8x128xf32, #tpu.memory_space<vmem>>, vector<1x8x128xf32>
    %129 = vector.shape_cast %128 : vector<1x8x128xf32> to vector<8x128xf32>
    %c0_34 = arith.constant 0 : index
    %130 = arith.index_cast %4 : i32 to index
    %c0_35 = arith.constant 0 : index
    %131 = vector.load %arg5[%c0_34, %130, %c0_35] : memref<3x8x128xf32, #tpu.memory_space<vmem>>, vector<1x8x128xf32>
    %132 = vector.shape_cast %131 : vector<1x8x128xf32> to vector<8x128xf32>
    %133 = arith.subf %129, %132 : vector<8x128xf32>
    %134 = arith.mulf %133, %133 : vector<8x128xf32>
    %c1_36 = arith.constant 1 : index
    %135 = arith.index_cast %4 : i32 to index
    %c0_37 = arith.constant 0 : index
    %136 = vector.load %arg3[%c1_36, %135, %c0_37] : memref<3x8x128xf32, #tpu.memory_space<vmem>>, vector<1x8x128xf32>
    %137 = vector.shape_cast %136 : vector<1x8x128xf32> to vector<8x128xf32>
    %c1_38 = arith.constant 1 : index
    %138 = arith.index_cast %4 : i32 to index
    %c0_39 = arith.constant 0 : index
    %139 = vector.load %arg5[%c1_38, %138, %c0_39] : memref<3x8x128xf32, #tpu.memory_space<vmem>>, vector<1x8x128xf32>
    %140 = vector.shape_cast %139 : vector<1x8x128xf32> to vector<8x128xf32>
    %141 = arith.subf %137, %140 : vector<8x128xf32>
    %142 = arith.mulf %141, %141 : vector<8x128xf32>
    %143 = arith.addf %134, %142 : vector<8x128xf32>
    %c2_40 = arith.constant 2 : index
    %144 = arith.index_cast %4 : i32 to index
    %c0_41 = arith.constant 0 : index
    %145 = vector.load %arg3[%c2_40, %144, %c0_41] : memref<3x8x128xf32, #tpu.memory_space<vmem>>, vector<1x8x128xf32>
    %146 = vector.shape_cast %145 : vector<1x8x128xf32> to vector<8x128xf32>
    %c2_42 = arith.constant 2 : index
    %147 = arith.index_cast %4 : i32 to index
    %c0_43 = arith.constant 0 : index
    %148 = vector.load %arg5[%c2_42, %147, %c0_43] : memref<3x8x128xf32, #tpu.memory_space<vmem>>, vector<1x8x128xf32>
    %149 = vector.shape_cast %148 : vector<1x8x128xf32> to vector<8x128xf32>
    %150 = arith.subf %146, %149 : vector<8x128xf32>
    %151 = arith.mulf %150, %150 : vector<8x128xf32>
    %152 = arith.addf %143, %151 : vector<8x128xf32>
    %153 = vector.broadcast %0 : f32 to vector<8x128xf32>
    %154 = arith.mulf %126, %153 : vector<8x128xf32>
    %cst_44 = arith.constant 0.000000e+00 : f32
    %155 = vector.broadcast %cst_44 : f32 to vector<8x128xf32>
    %156 = arith.subf %155, %154 : vector<8x128xf32>
    %157 = math.exp %156 : vector<8x128xf32>
    %cst_45 = arith.constant 2.000000e+00 : f32
    %158 = vector.broadcast %cst_45 : f32 to vector<8x128xf32>
    %159 = arith.subf %158, %157 : vector<8x128xf32>
    %160 = vector.broadcast %1 : f32 to vector<8x128xf32>
    %161 = arith.mulf %152, %160 : vector<8x128xf32>
    %cst_46 = arith.constant 0.000000e+00 : f32
    %162 = vector.broadcast %cst_46 : f32 to vector<8x128xf32>
    %163 = arith.subf %162, %161 : vector<8x128xf32>
    %164 = math.exp %163 : vector<8x128xf32>
    %165 = arith.subf %159, %164 : vector<8x128xf32>
    %166 = arith.addf %2, %165 : vector<8x128xf32>
    %c1_i32 = arith.constant 1 : i32
    %cst_47 = arith.constant dense<0.000000e+00> : vector<128xf32>
    %167 = vector.multi_reduction <add>, %166, %cst_47 [0] : vector<8x128xf32> to vector<128xf32>
    %168 = vector.shape_cast %167 : vector<128xf32> to vector<1x128xf32>
    %169 = vector.shape_cast %168 : vector<1x128xf32> to vector<1x1x128xf32>
    %c0_48 = arith.constant 0 : index
    %c0_49 = arith.constant 0 : index
    %c0_50 = arith.constant 0 : index
    %170 = vector.load %arg6[%c0_48, %c0_49, %c0_50] : memref<1x1x128xf32, #tpu.memory_space<vmem>>, vector<1x1x128xf32>
    tpu.vector_store %arg6[%c0_48, %c0_49, %c0_50], %169 {strides = array<i32>} : memref<1x1x128xf32, #tpu.memory_space<vmem>>, vector<1x1x128xf32>,
    return
  }
  func.func @transform_0(%arg0: i32) -> i32 {
    %c0_i32 = arith.constant 0 : i32
    %c0_i32_0 = arith.constant 0 : i32
    return %c0_i32 : i32
  }
  func.func @transform_1(%arg0: i32) -> (i32, i32, i32) {
    %c0_i32 = arith.constant 0 : i32
    %c0_i32_0 = arith.constant 0 : i32
    %c0_i32_1 = arith.constant 0 : i32
    return %c0_i32, %arg0, %c0_i32_0 : i32, i32, i32
  }
  func.func @transform_2(%arg0: i32) -> (i32, i32, i32) {
    %c0_i32 = arith.constant 0 : i32
    %c0_i32_0 = arith.constant 0 : i32
    %c0_i32_1 = arith.constant 0 : i32
    return %c0_i32, %arg0, %c0_i32_0 : i32, i32, i32
  }
  func.func @transform_3(%arg0: i32) -> (i32, i32, i32) {
    %c0_i32 = arith.constant 0 : i32
    %c0_i32_0 = arith.constant 0 : i32
    %c0_i32_1 = arith.constant 0 : i32
    return %c0_i32, %arg0, %c0_i32_0 : i32, i32, i32
  }
  func.func @transform_4(%arg0: i32) -> (i32, i32, i32) {
    %c0_i32 = arith.constant 0 : i32
    %c0_i32_0 = arith.constant 0 : i32
    %c0_i32_1 = arith.constant 0 : i32
    return %c0_i32, %arg0, %c0_i32_0 : i32, i32, i32
  }
  func.func @transform_5(%arg0: i32) -> (i32, i32, i32) {
    %c0_i32 = arith.constant 0 : i32
    %c0_i32_0 = arith.constant 0 : i32
    %c0_i32_1 = arith.constant 0 : i32
    return %arg0, %c0_i32, %c0_i32_0 : i32, i32, i32
  }
}

</mosaic_0001>

<llo_original>
// kernel: mcc_loss_v3.1
$region0: #{mcc_loss_v3.1}
  #allocation0 [shape = 'u32[]', space=smem, size = 0x4, offset = 0x4, fixed_abs, tag = 'smem constant byte address 0x4 - core index']
  #allocation1 [shape = 'u32[72,128]{1,0:T(1,128)}', space=vmem, size = 0x9000, scoped, tag = 'internal scratch']
  %s0 = inlined_call_operand.vmem [shape: f32[2], index: 0, kind: input, shape index: {}]
  %s1 = inlined_call_operand.vmem [shape: f32[9,8,128], index: 1, kind: input, shape index: {}]
  %s2 = inlined_call_operand.vmem [shape: f32[3,8,128], index: 2, kind: input, shape index: {}]
  %s3 = inlined_call_operand.vmem [shape: f32[9,8,128], index: 3, kind: input, shape index: {}]
  %s4 = inlined_call_operand.vmem [shape: f32[3,8,128], index: 4, kind: input, shape index: {}]
  %s5 = inlined_call_operand.vmem [shape: f32[1,1,128], index: 5, kind: output, shape index: {}]
  %s6 = sld [smem:[#allocation0]]
  $region34: #{mcc_loss_v3.1} parent=0
    _
  %s8 = ssub.s32 1, %s6
  %s9 = scalar_select 0, %s8, %s6
  $region1: #{mcc_loss_v3.1} parent=0
    #allocation2 [shape = 'u8[512]{0}', space=smem, size = 0x200, scoped, tag = 'input window, operand 0, single buffered']
    #allocation3 [shape = 's32[1]{0}', space=sflag, size = 0x4, scoped, tag = 'scoped memory for mcc_loss_v3.1']
    %10 = vsyncpa [#allocation3], 0
    // Predicated region
    $region2: #{mcc_loss_v3.1} parent=1 // pred_check
      _
    $region3: #{mcc_loss_v3.1} parent=1 // pred_check_branch
      %12 = sbr.rel (0) target = $region5
    $region4: #{mcc_loss_v3.1} parent=1 // pred_region
      %14 = vsyncadd [#allocation3], 0
      %s16 = sshll.u32 %s0, 4
      %s17 = int_to_ptr.vmem [resolvable:$true] %s16
      %19 = dma.vmem_to_smem %s17, 16, [#allocation2], [#allocation3]
    $region5: #{mcc_loss_v3.1} parent=1 // pred_fallthru
      _
    // Predicated region
    $region6: #{mcc_loss_v3.1} parent=1 // pred_check
      _
    $region7: #{mcc_loss_v3.1} parent=1 // pred_check_branch
      %21 = sbr.rel (0) target = $region9
    $region8: #{mcc_loss_v3.1} parent=1 // pred_region
      _
    $region9: #{mcc_loss_v3.1} parent=1 // pred_fallthru
      _
    // Predicated region
    $region10: #{mcc_loss_v3.1} parent=1 // pred_check
      _
    $region11: #{mcc_loss_v3.1} parent=1 // pred_check_branch
      %23 = sbr.rel (0) target = $region13
    $region12: #{mcc_loss_v3.1} parent=1 // pred_region
      _
    $region13: #{mcc_loss_v3.1} parent=1 // pred_fallthru
      _
    // Predicated region
    $region14: #{mcc_loss_v3.1} parent=1 // pred_check
      _
    $region15: #{mcc_loss_v3.1} parent=1 // pred_check_branch
      %25 = sbr.rel (0) target = $region17
    $region16: #{mcc_loss_v3.1} parent=1 // pred_region
      _
    $region17: #{mcc_loss_v3.1} parent=1 // pred_fallthru
      _
    // Predicated region
    $region18: #{mcc_loss_v3.1} parent=1 // pred_check
      _
    $region19: #{mcc_loss_v3.1} parent=1 // pred_check_branch
      %27 = sbr.rel (0) target = $region21
    $region20: #{mcc_loss_v3.1} parent=1 // pred_region
      _
    $region21: #{mcc_loss_v3.1} parent=1 // pred_fallthru
      _
    // Predicated region
    $region22: #{mcc_loss_v3.1} parent=1 // pred_check
      _
    $region23: #{mcc_loss_v3.1} parent=1 // pred_check_branch
      %29 = sbr.rel (0) target = $region25
    $region24: #{mcc_loss_v3.1} parent=1 // pred_region
      %31 = dma.done [#allocation3], 16
    $region25: #{mcc_loss_v3.1} parent=1 // pred_fallthru
      _
    %32 = sfence
    %s33 = sld [smem:[#allocation2]]
    %s34 = sld [smem:[#allocation2 + $0x1]]
    %v35 = vld [vmem:[%s1] sm:$0xff]
    %s36 = sadd.s32 0, 8
    %s37 = scalar_lea.vmem %s1, %s36
    %v38 = vld [vmem:[%s37] sm:$0xff]
    %s39 = sadd.s32 0, 16
    %s40 = scalar_lea.vmem %s1, %s39
    %v41 = vld [vmem:[%s40] sm:$0xff]
    %s42 = sadd.s32 0, 24
    %s43 = scalar_lea.vmem %s1, %s42
    %v44 = vld [vmem:[%s43] sm:$0xff]
    %s45 = sadd.s32 0, 32
    %s46 = scalar_lea.vmem %s1, %s45
    %v47 = vld [vmem:[%s46] sm:$0xff]
    %s48 = sadd.s32 0, 40
    %s49 = scalar_lea.vmem %s1, %s48
    %v50 = vld [vmem:[%s49] sm:$0xff]
    %s51 = sadd.s32 0, 48
    %s52 = scalar_lea.vmem %s1, %s51
    %v53 = vld [vmem:[%s52] sm:$0xff]
    %s54 = sadd.s32 0, 56
    %s55 = scalar_lea.vmem %s1, %s54
    %v56 = vld [vmem:[%s55] sm:$0xff]
    %s57 = sadd.s32 0, 64
    %s58 = scalar_lea.vmem %s1, %s57
    %v59 = vld [vmem:[%s58] sm:$0xff]
    %v60 = vld [vmem:[%s3] sm:$0xff]
    %s61 = scalar_lea.vmem %s3, %s36
    %v62 = vld [vmem:[%s61] sm:$0xff]
    %s63 = scalar_lea.vmem %s3, %s39
    %v64 = vld [vmem:[%s63] sm:$0xff]
    %s65 = scalar_lea.vmem %s3, %s42
    %v66 = vld [vmem:[%s65] sm:$0xff]
    %s67 = scalar_lea.vmem %s3, %s45
    %v68 = vld [vmem:[%s67] sm:$0xff]
    %s69 = scalar_lea.vmem %s3, %s48
    %v70 = vld [vmem:[%s69] sm:$0xff]
    %s71 = scalar_lea.vmem %s3, %s51
    %v72 = vld [vmem:[%s71] sm:$0xff]
    %s73 = scalar_lea.vmem %s3, %s54
    %v74 = vld [vmem:[%s73] sm:$0xff]
    %s75 = scalar_lea.vmem %s3, %s57
    %v76 = vld [vmem:[%s75] sm:$0xff]
    %v77 = vmul.f32 %v35, %v60
    %v78 = vmul.f32 %v44, %v66
    %v79 = vadd.f32 %v77, %v78
    %v80 = vmul.f32 %v53, %v72
    %v81 = vadd.f32 %v79, %v80
    %v82 = vsub.f32 %v81, 1.0
    %v83 = vmul.f32 %v82, %v82
    %v84 = vmul.f32 %v35, %v62
    %v85 = vmul.f32 %v44, %v68
    %v86 = vadd.f32 %v84, %v85
    %v87 = vmul.f32 %v53, %v74
    %v88 = vadd.f32 %v86, %v87
    %v89 = vmul.f32 %v88, %v88
    %v90 = vadd.f32 %v83, %v89
    %v91 = vmul.f32 %v35, %v64
    %v92 = vmul.f32 %v44, %v70
    %v93 = vadd.f32 %v91, %v92
    %v94 = vmul.f32 %v53, %v76
    %v95 = vadd.f32 %v93, %v94
    %v96 = vmul.f32 %v95, %v95
    %v97 = vadd.f32 %v90, %v96
    %v98 = vmul.f32 %v38, %v60
    %v99 = vmul.f32 %v47, %v66
    %v100 = vadd.f32 %v98, %v99
    %v101 = vmul.f32 %v56, %v72
    %v102 = vadd.f32 %v100, %v101
    %v103 = vmul.f32 %v102, %v102
    %v104 = vadd.f32 %v97, %v103
    %v105 = vmul.f32 %v38, %v62
    %v106 = vmul.f32 %v47, %v68
    %v107 = vadd.f32 %v105, %v106
    %v108 = vmul.f32 %v56, %v74
    %v109 = vadd.f32 %v107, %v108
    %v110 = vsub.f32 %v109, 1.0
    %v111 = vmul.f32 %v110, %v110
    %v112 = vadd.f32 %v104, %v111
    %v113 = vmul.f32 %v38, %v64
    %v114 = vmul.f32 %v47, %v70
    %v115 = vadd.f32 %v113, %v114
    %v116 = vmul.f32 %v56, %v76
    %v117 = vadd.f32 %v115, %v116
    %v118 = vmul.f32 %v117, %v117
    %v119 = vadd.f32 %v112, %v118
    %v120 = vmul.f32 %v41, %v60
    %v121 = vmul.f32 %v50, %v66
    %v122 = vadd.f32 %v120, %v121
    %v123 = vmul.f32 %v59, %v72
    %v124 = vadd.f32 %v122, %v123
    %v125 = vmul.f32 %v124, %v124
    %v126 = vadd.f32 %v119, %v125
    %v127 = vmul.f32 %v41, %v62
    %v128 = vmul.f32 %v50, %v68
    %v129 = vadd.f32 %v127, %v128
    %v130 = vmul.f32 %v59, %v74
    %v131 = vadd.f32 %v129, %v130
    %v132 = vmul.f32 %v131, %v131
    %v133 = vadd.f32 %v126, %v132
    %v134 = vmul.f32 %v41, %v64
    %v135 = vmul.f32 %v50, %v70
    %v136 = vadd.f32 %v134, %v135
    %v137 = vmul.f32 %v59, %v76
    %v138 = vadd.f32 %v136, %v137
    %v139 = vsub.f32 %v138, 1.0
    %v140 = vmul.f32 %v139, %v139
    %v141 = vadd.f32 %v133, %v140
    %v142 = vld [vmem:[%s2] sm:$0xff]
    %v143 = vld [vmem:[%s4] sm:$0xff]
    %v144 = vsub.f32 %v142, %v143
    %v145 = vmul.f32 %v144, %v144
    %s146 = scalar_lea.vmem %s2, %s36
    %v147 = vld [vmem:[%s146] sm:$0xff]
    %s148 = scalar_lea.vmem %s4, %s36
    %v149 = vld [vmem:[%s148] sm:$0xff]
    %v150 = vsub.f32 %v147, %v149
    %v151 = vmul.f32 %v150, %v150
    %v152 = vadd.f32 %v145, %v151
    %s153 = scalar_lea.vmem %s2, %s39
    %v154 = vld [vmem:[%s153] sm:$0xff]
    %s155 = scalar_lea.vmem %s4, %s39
    %v156 = vld [vmem:[%s155] sm:$0xff]
    %v157 = vsub.f32 %v154, %v156
    %v158 = vmul.f32 %v157, %v157
    %v159 = vadd.f32 %v152, %v158
    %v160 = vstv %s33
    %v161 = vmul.f32 %v141, %v160
    %v162 = vsub.f32 0.0, %v161
    %v163 = vmul.f32 %v162, 1.442695
    %v164 = vpow.pop %v163
    %v165 = vsub.f32 2.0, %v164
    %v166 = vstv %s34
    %v167 = vmul.f32 %v159, %v166
    %v168 = vsub.f32 0.0, %v167
    %v169 = vmul.f32 %v168, 1.442695
    %v170 = vpow.pop %v169
    %v171 = vsub.f32 %v165, %v170
    %v172 = vadd.f32 %v171, 0.0
    %v173 = vrot.slane %v172, 4
    %v174 = vadd.f32 %v172, %v173
    %v175 = vrot.slane %v174, 2
    %v176 = vadd.f32 %v174, %v175
    %v177 = vrot.slane %v176, 1
    %v178 = vadd.f32 %v176, %v177
    %179 = vst [vmem:[%s5] sm:$0x1] %v178
    // Predicated region
    $region26: #{mcc_loss_v3.1} parent=1 // pred_check
      _
    $region27: #{mcc_loss_v3.1} parent=1 // pred_check_branch
      %181 = sbr.rel (0) target = $region29
    $region28: #{mcc_loss_v3.1} parent=1 // pred_region
      _
    $region29: #{mcc_loss_v3.1} parent=1 // pred_fallthru
      _
    // Predicated region
    $region30: #{mcc_loss_v3.1} parent=1 // pred_check
      _
    $region31: #{mcc_loss_v3.1} parent=1 // pred_check_branch
      %183 = sbr.rel (0) target = $region33
    $region32: #{mcc_loss_v3.1} parent=1 // pred_region
      _
    $region33: #{mcc_loss_v3.1} parent=1 // pred_fallthru
      _
    %184 = vsyncpa [#allocation3], 1

</llo_original>
